<compile_context>
chip_gen: v6e
topology: v6e:2x2x1
jax: 0.10.0
libtpu: 0.0.40
codegen_flags: <defaults>
</compile_context>

<pallas_src>
import copy
import numpy as np
import jax
import jax.numpy as jnp
from jax.experimental import pallas as pl
from jax.experimental.pallas import tpu as pltpu


def _round_up(a, b):
    return ((a + b - 1) // b) * b


def _choose_row_tiling(M, Kp, Cop, act_bytes, row_align,
                       vmem_budget=24 << 20, tm_target=2048):
    """Pick a large row tile that fits VMEM (double-buffered); prefer an even
    number of tiles so v7x's 2 TensorCores both get work."""
    tm = min(tm_target, _round_up(max(1, (M + 1) // 2), row_align))
    tm = max(tm, row_align)

    def vmem_use(t):
        return (2 * t * Kp * act_bytes      # activation blocks (double-buffered)
                + 2 * t * Cop * 4           # output blocks (double-buffered, f32)
                + 2 * Kp * Cop * act_bytes  # resident weights (count 2 buffers)
                + 2 * Cop * 4)              # resident bias

    while tm > row_align and vmem_use(tm) > vmem_budget:
        tm = max(row_align, _round_up(tm // 2, row_align))

    num_tiles = -(-M // tm)
    if num_tiles > 1 and num_tiles % 2 == 1:
        num_tiles += 1  # even parallel grid for v7x megacore
    return tm, num_tiles


def _conv_gemm_kernel(x_ref, w_ref, b_ref, o_ref):
    # x_ref: (tm, Kp)   row tile of the folded (im2col) activations
    # w_ref: (Kp, Cop)  folded filter — resident across the grid (constant index_map)
    # b_ref: (1, Cop)   bias — resident
    # o_ref: (tm, Cop)  lane-dense output tile
    acc = jnp.dot(x_ref[...], w_ref[...], preferred_element_type=jnp.float32)
    o_ref[...] = (acc + b_ref[...]).astype(o_ref.dtype)


class CylindricalConvPallas:
    """JAX/Pallas port of calodiffusion CylindricalConv (groups == 1)."""

    def __init__(self, dim_in, dim_out, kernel_size=3, stride=1, groups=1,
                 padding=0, bias=True, *, key, compute_dtype=jnp.float32):
        if groups != 1:
            # TODO(synk): grouped convolution not implemented (module default is groups=1)
            raise NotImplementedError("groups != 1 not supported")

        if type(padding) != int:
            self.padding_orig = list(copy.copy(padding))
            padding = list(padding)
            padding[1] = 0
        else:
            padding = [padding] * 3
            self.padding_orig = copy.copy(padding)
            padding[1] = 0
        self.zero_pad = padding  # (pad_d, 0, pad_w) applied as zero padding by the conv

        self.kernel_size = ((kernel_size,) * 3 if isinstance(kernel_size, int)
                            else tuple(kernel_size))
        self.stride = (stride,) * 3 if isinstance(stride, int) else tuple(stride)
        self.dim_in = dim_in
        self.dim_out = dim_out
        self.compute_dtype = compute_dtype

        kD, kH, kW = self.kernel_size
        fan_in = dim_in * kD * kH * kW
        bound = 1.0 / (fan_in ** 0.5)
        k_w, k_b = jax.random.split(key)
        # PyTorch Conv3d weight layout: (Cout, Cin, kD, kH, kW)
        self.weight = jax.random.uniform(
            k_w, (dim_out, dim_in, kD, kH, kW), jnp.float32, -bound, bound)
        self.bias = (jax.random.uniform(k_b, (dim_out,), jnp.float32, -bound, bound)
                     if bias else jnp.zeros((dim_out,), jnp.float32))

    def __call__(self, x):
        # x: (N, Cin, D, H, W)  -- PyTorch NCDHW
        in_dtype = x.dtype
        N, Cin, D, H, W = x.shape
        assert Cin == self.dim_in
        kD, kH, kW = self.kernel_size
        sD, sH, sW = self.stride
        pd, _, pw = self.zero_pad
        ph = self.padding_orig[1]  # circular pad amount along H (phi axis)

        # --- padding (glue, plain JAX) ---
        if ph > 0:  # F.pad(..., mode='circular') on dim H
            x = jnp.concatenate([x[:, :, :, -ph:, :], x, x[:, :, :, :ph, :]], axis=3)
        x = jnp.pad(x, ((0, 0), (0, 0), (pd, pd), (0, 0), (pw, pw)))

        Dp, Hp, Wp = x.shape[2], x.shape[3], x.shape[4]
        Do = (Dp - kD) // sD + 1
        Ho = (Hp - kH) // sH + 1
        Wo = (Wp - kW) // sW + 1
        M = N * Do * Ho * Wo
        K = kD * kH * kW * Cin
        cout = self.dim_out

        # lane-dense padded contraction / output-channel sizes
        Kp = _round_up(K, 128)
        Cop = _round_up(cout, 128)

        # row tiling (large tiles, even parallel grid, padded M, VMEM-budgeted)
        act_bytes = jnp.dtype(self.compute_dtype).itemsize
        row_align = 16 if self.compute_dtype == jnp.bfloat16 else 8
        tm, num_tiles = _choose_row_tiling(M, Kp, Cop, act_bytes, row_align)
        M_pad = tm * num_tiles

        # --- im2col glue (plain JAX): fold all conv taps into the K dimension.
        # TODO(synk): this materializes a kD*kH*kW-fold duplicated activation matrix in
        # HBM; a fully traffic-minimal version would manual-DMA shifted windows of the
        # padded channels-last tensor inside the kernel (memory_space=pl.ANY) instead.
        xn = jnp.transpose(x, (0, 2, 3, 4, 1)).astype(self.compute_dtype)  # (N,Dp,Hp,Wp,Cin)
        cols = []
        for kd in range(kD):
            for kh in range(kH):
                for kw in range(kW):
                    v = xn[:, kd:kd + (Do - 1) * sD + 1:sD,
                              kh:kh + (Ho - 1) * sH + 1:sH,
                              kw:kw + (Wo - 1) * sW + 1:sW, :]
                    cols.append(v.reshape(M, Cin))
        x_col = jnp.concatenate(cols, axis=1)                        # (M, K)
        x_col = jnp.pad(x_col, ((0, M_pad - M), (0, Kp - K)))        # (M_pad, Kp)

        # weight (Cout, Cin, kD, kH, kW) -> (K, Cout) -> zero-padded (Kp, Cop)
        w_col = jnp.transpose(self.weight, (2, 3, 4, 1, 0)).reshape(K, cout)
        w_col = jnp.pad(w_col, ((0, Kp - K), (0, Cop - cout))).astype(self.compute_dtype)
        # bias stays f32 (added to the f32 accumulator)
        b_col = jnp.pad(self.bias, (0, Cop - cout)).reshape(1, Cop).astype(jnp.float32)

        out = pl.pallas_call(
            _conv_gemm_kernel,
            out_shape=jax.ShapeDtypeStruct((M_pad, Cop), jnp.float32),
            grid_spec=pltpu.PrefetchScalarGridSpec(
                num_scalar_prefetch=0,
                grid=(num_tiles,),
                in_specs=[
                    pl.BlockSpec((tm, Kp), lambda i: (i, 0)),      # activations, tiled
                    pl.BlockSpec((Kp, Cop), lambda i: (0, 0)),     # weights, resident
                    pl.BlockSpec((1, Cop), lambda i: (0, 0)),      # bias, resident
                ],
                out_specs=pl.BlockSpec((tm, Cop), lambda i: (i, 0)),
            ),
            compiler_params=pltpu.CompilerParams(
                dimension_semantics=("parallel",),
                vmem_limit_bytes=32 * 1024 * 1024),
        )(x_col, w_col, b_col)

        # (M_pad, Cop) -> slice padding -> (N, Do, Ho, Wo, Cout) -> NCDHW
        out = out[:M, :cout].astype(in_dtype).reshape(N, Do, Ho, Wo, cout)
        return jnp.transpose(out, (0, 4, 1, 2, 3))


def reference_forward(mod, x):
    """Pure-JAX reference (circular pad + lax conv), mirrors the PyTorch module."""
    ph = mod.padding_orig[1]
    if ph > 0:
        x = jnp.concatenate([x[:, :, :, -ph:, :], x, x[:, :, :, :ph, :]], axis=3)
    out = jax.lax.conv_general_dilated(
        x, mod.weight,
        window_strides=mod.stride,
        padding=[(mod.zero_pad[0], mod.zero_pad[0]),
                 (0, 0),
                 (mod.zero_pad[2], mod.zero_pad[2])],
        dimension_numbers=('NCDHW', 'OIDHW', 'NCDHW'))
    return out + mod.bias.reshape(1, -1, 1, 1, 1)


if __name__ == "__main__":
    key = jax.random.PRNGKey(0)
    k_x, k_p = jax.random.split(key)

    N, Cin, Cout = 2, 4, 8
    D, H, W = 8, 8, 8
    x = jax.random.normal(k_x, (N, Cin, D, H, W), jnp.float32)

    # f32 path (bit-faithful to the PyTorch module's numerics)
    conv = CylindricalConvPallas(Cin, Cout, kernel_size=3, stride=1,
                                 groups=1, padding=1, bias=True, key=k_p)
    y = jax.block_until_ready(jax.jit(conv.__call__)(x))
    y_ref = jax.block_until_ready(reference_forward(conv, x))
    assert y.shape == (N, Cout, D, H, W), y.shape
    np.testing.assert_allclose(np.asarray(y), np.asarray(y_ref), rtol=1e-4, atol=1e-4)

    print("KERNEL_OK")
</pallas_src>

<mosaic_0001>
module attributes {stable_mosaic.version = 11 : i64} {
  func.func @_conv_gemm_kernel(%arg0: i32, %arg1: memref<512x128xf32, #tpu.memory_space<vmem>>, %arg2: memref<128x128xf32, #tpu.memory_space<vmem>>, %arg3: memref<1x128xf32, #tpu.memory_space<vmem>>, %arg4: memref<512x128xf32, #tpu.memory_space<vmem>>) attributes {dimension_semantics = [#tpu.dimension_semantics<parallel>], iteration_bounds = array<i64: 2>, scalar_prefetch = 0 : i64, scratch_operands = 0 : i64, tpu.core_type = #tpu.core_type<tc>, window_params = [{transform_indices = @transform_0, window_bounds = array<i64: 512, 128>}, {pipeline_mode = #tpu.pipeline_mode<synchronous>, transform_indices = @transform_1, window_bounds = array<i64: 128, 128>}, {pipeline_mode = #tpu.pipeline_mode<synchronous>, transform_indices = @transform_2, window_bounds = array<i64: 1, 128>}, {transform_indices = @transform_3, window_bounds = array<i64: 512, 128>}]} {
    %c0 = arith.constant 0 : index
    %c0_0 = arith.constant 0 : index
    %0 = vector.load %arg1[%c0, %c0_0] : memref<512x128xf32, #tpu.memory_space<vmem>>, vector<512x128xf32>
    %c0_1 = arith.constant 0 : index
    %c0_2 = arith.constant 0 : index
    %1 = vector.load %arg2[%c0_1, %c0_2] : memref<128x128xf32, #tpu.memory_space<vmem>>, vector<128x128xf32>
    %cst = arith.constant dense<0.000000e+00> : vector<512x128xf32>
    %2 = tpu.matmul %0, %1, %cst {dimension_numbers = #tpu.dot_dimension_numbers<[1], [0], [0], [1], [0, 0, 1, 1], [], []>} : vector<512x128xf32>, vector<128x128xf32>, vector<512x128xf32> -> vector<512x128xf32>
    %c0_3 = arith.constant 0 : index
    %c0_4 = arith.constant 0 : index
    %3 = vector.load %arg3[%c0_3, %c0_4] : memref<1x128xf32, #tpu.memory_space<vmem>>, vector<1x128xf32>
    %4 = vector.broadcast %3 : vector<1x128xf32> to vector<512x128xf32>
    %5 = arith.addf %2, %4 : vector<512x128xf32>
    %c0_5 = arith.constant 0 : index
    %c0_6 = arith.constant 0 : index
    %6 = vector.load %arg4[%c0_5, %c0_6] : memref<512x128xf32, #tpu.memory_space<vmem>>, vector<512x128xf32>
    tpu.vector_store %arg4[%c0_5, %c0_6], %5 {strides = array<i32>} : memref<512x128xf32, #tpu.memory_space<vmem>>, vector<512x128xf32>,
    return
  }
  func.func @transform_0(%arg0: i32) -> (i32, i32) {
    %c0_i32 = arith.constant 0 : i32
    %c0_i32_0 = arith.constant 0 : i32
    return %arg0, %c0_i32 : i32, i32
  }
  func.func @transform_1(%arg0: i32) -> (i32, i32) {
    %c0_i32 = arith.constant 0 : i32
    %c0_i32_0 = arith.constant 0 : i32
    %c0_i32_1 = arith.constant 0 : i32
    return %c0_i32, %c0_i32_0 : i32, i32
  }
  func.func @transform_2(%arg0: i32) -> (i32, i32) {
    %c0_i32 = arith.constant 0 : i32
    %c0_i32_0 = arith.constant 0 : i32
    %c0_i32_1 = arith.constant 0 : i32
    return %c0_i32, %c0_i32_0 : i32, i32
  }
  func.func @transform_3(%arg0: i32) -> (i32, i32) {
    %c0_i32 = arith.constant 0 : i32
    %c0_i32_0 = arith.constant 0 : i32
    return %arg0, %c0_i32 : i32, i32
  }
}

</mosaic_0001>

<llo_original>
// kernel: a_call__.1
$region0: #{a_call__.1}
  #allocation0 [shape = 'u32[]', space=smem, size = 0x4, offset = 0x4, fixed_abs, tag = 'smem constant byte address 0x4 - core index']
  #allocation1 [shape = 'u32[144,128]{1,0:T(1,128)}', space=vmem, size = 0x12000, scoped, tag = 'internal scratch']
  %s0 = inlined_call_operand.vmem [shape: f32[1024,128], index: 0, kind: input, shape index: {}]
  %s1 = inlined_call_operand.vmem [shape: f32[128,128], index: 1, kind: input, shape index: {}]
  %s2 = inlined_call_operand.vmem [shape: f32[1,128], index: 2, kind: input, shape index: {}]
  %s3 = inlined_call_operand.vmem [shape: f32[1024,128], index: 3, kind: output, shape index: {}]
  %s4 = sld [smem:[#allocation0]]
  $region45: #{a_call__.1} parent=0
    _
  %s6 = ssub.s32 1, %s4
  %s7 = scalar_select 0, %s6, %s4
  loop: start=0, step=1, limit=4
  $region2: #{a_call__.1} parent=0 // loop_pre_header
    _
  $region3: #{a_call__.1} parent=0 // loop_header
    %s9 = sphi 0, %s13
    %p10 = scmp.ge.s32.totalorder %s9, 4
    %s19 = sphi 0, %s21
    %s22 = sphi 0, %s19
    %s23 = sphi 0, %s22
    %s39 = sphi 0, %s23
    %s43 = sphi 0, %s43
    %s45 = sphi 0, %s43
    %s46 = sphi 0, %s45
    %s60 = sphi 0, %s46
    %s64 = sphi 0, %s64
    %s66 = sphi 0, %s64
    %s67 = sphi 0, %s66
    %s81 = sphi 0, %s67
    %s87 = sphi 0, %s89
    %s90 = sphi 0, %s87
    %s91 = sphi 0, %s90
    %s107 = sphi 0, %s91
  $region4: #{a_call__.1} parent=0 // loop_header_branch
    %12 = sbr.rel (%p10) target = $region8
  $region5: #{a_call__.1} parent=0 // loop_body
    %s14 = ssub.s32 %s9, 1
    %s15 = ssub.s32 %s9, 2
    %s16 = sadd.s32 %s9, 1
    %s17 = ssub.s32 %s9, %s16
    %p18 = scmp.eq.s32.totalorder %s17, 0
    %s20 = sadd.s32 %s19, 1
    %s21 = scalar_select %p18, %s19, %s20
    %p24 = pneg %p18
    %p25 = scmp.eq.s32.totalorder %s9, 1
    %p26 = por %p24, %p25
    %p27 = scmp.ne.s32.totalorder %s19, %s22
    %p28 = scmp.eq.s32.totalorder %s9, 0
    %p29 = por %p27, %p28
    %p30 = scmp.ne.s32.totalorder %s19, %s22
    %p31 = scmp.eq.s32.totalorder %s14, 1
    %p32 = por %p30, %p31
    %p33 = scmp.ne.s32.totalorder %s22, %s23
    %p34 = scmp.eq.s32.totalorder %s14, 0
    %p35 = por %p33, %p34
    %p36 = scmp.ne.s32.totalorder %s22, %s23
    %p37 = scmp.eq.s32.totalorder %s15, 1
    %p38 = por %p36, %p37
    %p40 = scmp.ne.s32.totalorder %s23, %s39
    %p41 = scmp.eq.s32.totalorder %s15, 0
    %p42 = por %p40, %p41
    %s44 = sadd.s32 %s43, 1
    %p47 = scmp.eq.s32.totalorder %s9, 1
    %p48 = scmp.ne.s32.totalorder %s43, %s45
    %p49 = scmp.eq.s32.totalorder %s9, 0
    %p50 = por %p48, %p49
    %p51 = scmp.ne.s32.totalorder %s43, %s45
    %p52 = scmp.eq.s32.totalorder %s14, 1
    %p53 = por %p51, %p52
    %p54 = scmp.ne.s32.totalorder %s45, %s46
    %p55 = scmp.eq.s32.totalorder %s14, 0
    %p56 = por %p54, %p55
    %p57 = scmp.ne.s32.totalorder %s45, %s46
    %p58 = scmp.eq.s32.totalorder %s15, 1
    %p59 = por %p57, %p58
    %p61 = scmp.ne.s32.totalorder %s46, %s60
    %p62 = scmp.eq.s32.totalorder %s15, 0
    %p63 = por %p61, %p62
    %s65 = sadd.s32 %s64, 1
    %p68 = scmp.eq.s32.totalorder %s9, 1
    %p69 = scmp.ne.s32.totalorder %s64, %s66
    %p70 = scmp.eq.s32.totalorder %s9, 0
    %p71 = por %p69, %p70
    %p72 = scmp.ne.s32.totalorder %s64, %s66
    %p73 = scmp.eq.s32.totalorder %s14, 1
    %p74 = por %p72, %p73
    %p75 = scmp.ne.s32.totalorder %s66, %s67
    %p76 = scmp.eq.s32.totalorder %s14, 0
    %p77 = por %p75, %p76
    %p78 = scmp.ne.s32.totalorder %s66, %s67
    %p79 = scmp.eq.s32.totalorder %s15, 1
    %p80 = por %p78, %p79
    %p82 = scmp.ne.s32.totalorder %s67, %s81
    %p83 = scmp.eq.s32.totalorder %s15, 0
    %p84 = por %p82, %p83
    %s85 = ssub.s32 %s9, %s16
    %p86 = scmp.eq.s32.totalorder %s85, 0
    %s88 = sadd.s32 %s87, 1
    %s89 = scalar_select %p86, %s87, %s88
    %p92 = pneg %p86
    %p93 = scmp.eq.s32.totalorder %s9, 1
    %p94 = por %p92, %p93
    %p95 = scmp.ne.s32.totalorder %s87, %s90
    %p96 = scmp.eq.s32.totalorder %s9, 0
    %p97 = por %p95, %p96
    %p98 = scmp.ne.s32.totalorder %s87, %s90
    %p99 = scmp.eq.s32.totalorder %s14, 1
    %p100 = por %p98, %p99
    %p101 = scmp.ne.s32.totalorder %s90, %s91
    %p102 = scmp.eq.s32.totalorder %s14, 0
    %p103 = por %p101, %p102
    %p104 = scmp.ne.s32.totalorder %s90, %s91
    %p105 = scmp.eq.s32.totalorder %s15, 1
    %p106 = por %p104, %p105
    %p108 = scmp.ne.s32.totalorder %s91, %s107
    %p109 = scmp.eq.s32.totalorder %s15, 0
    %p110 = por %p108, %p109
    %p111 = scmp.le.s32.totalorder 1, %s9
    %p112 = scmp.lt.s32.totalorder %s9, 3
    %p113 = pnand %p111, %p112
    %p114 = pneg %p113
    // Predicated region
    $region9: #{a_call__.1} parent=5 // pred_check
      _
    $region10: #{a_call__.1} parent=5 // pred_check_branch
      %116 = sbr.rel (%p113) target = $region12
    $region11: #{a_call__.1} parent=5 // pred_region
      %s117 = ssub.s32 %s9, 1
      // Predicated region
      $region13: #{a_call__.1} parent=11 // pred_check
        %p118 = pneg %p56
      $region14: #{a_call__.1} parent=11 // pred_check_branch
        %120 = sbr.rel (%p118) target = $region16
      $region15: #{a_call__.1} parent=11 // pred_region
        _
      $region16: #{a_call__.1} parent=11 // pred_fallthru
        _
      // Predicated region
      $region17: #{a_call__.1} parent=11 // pred_check
        %p121 = pneg %p77
      $region18: #{a_call__.1} parent=11 // pred_check_branch
        %123 = sbr.rel (%p121) target = $region20
      $region19: #{a_call__.1} parent=11 // pred_region
        _
      $region20: #{a_call__.1} parent=11 // pred_fallthru
        _
    $region12: #{a_call__.1} parent=5 // pred_fallthru
      _
    %p124 = scmp.lt.s32.totalorder %s9, 2
    // Predicated region
    $region21: #{a_call__.1} parent=5 // pred_check
      %p125 = pneg %p124
    $region22: #{a_call__.1} parent=5 // pred_check_branch
      %127 = sbr.rel (%p125) target = $region24
    $region23: #{a_call__.1} parent=5 // pred_region
      // Predicated region
      $region25: #{a_call__.1} parent=23 // pred_check
        %p128 = pneg %p29
      $region26: #{a_call__.1} parent=23 // pred_check_branch
        %130 = sbr.rel (%p128) target = $region28
      $region27: #{a_call__.1} parent=23 // pred_region
        %s131 = smul.u32 64, %s9
        %p132 = scmp.lt.s32.totalorder %s131, 127
        %s133 = scalar_select %p132, %s131, 127
        %s134 = smul.addr %s133, 8
        %s135 = scalar_lea.vmem %s0, %s134
        %s136 = smul.u32 64, %s9
      $region28: #{a_call__.1} parent=23 // pred_fallthru
        _
    $region24: #{a_call__.1} parent=5 // pred_fallthru
      _
    %p137 = scmp.le.s32.totalorder 1, %s9
    %p138 = scmp.lt.s32.totalorder %s9, 3
    %p139 = pnand %p137, %p138
    %p140 = pneg %p139
    // Predicated region
    $region29: #{a_call__.1} parent=5 // pred_check
      _
    $region30: #{a_call__.1} parent=5 // pred_check_branch
      %142 = sbr.rel (%p139) target = $region32
    $region31: #{a_call__.1} parent=5 // pred_region
      %s143 = ssub.s32 %s9, 1
      %s144 = smul.u32 64, %s14
      %p145 = scmp.lt.s32.totalorder %s144, 127
      %s146 = scalar_select %p145, %s144, 127
      %s147 = smul.addr %s146, 8
      %s148 = scalar_lea.vmem %s0, %s147
      %p149 = pneg %p35
      %p150 = pneg %p32
      %p151 = pneg %p56
      %p152 = pneg %p53
      %p153 = pneg %p77
      %p154 = pneg %p74
      %p155 = pneg %p103
      %p156 = pneg %p100
      %s157 = smul.u32 64, %s14
      %p158 = scmp.lt.s32.totalorder %s157, 127
      %s159 = scalar_select %p158, %s157, 127
      %s160 = smul.addr %s159, 8
      %s161 = scalar_lea.vmem %s3, %s160
      %s162 = smul.u32 64, %s14
      %p163 = scmp.lt.s32.totalorder %s162, 127
      %s164 = scalar_select %p163, %s162, 127
      %s165 = smul.addr %s164, 8
      %s166 = scalar_lea.vmem %s0, %s165
      %s167 = smul.u32 64, %s14
      %s168 = smul.u32 64, %s14
      %p169 = scmp.lt.s32.totalorder %s168, 127
      %s170 = scalar_select %p169, %s168, 127
      %s171 = smul.addr %s170, 8
      %s172 = scalar_lea.vmem %s3, %s171
      %s173 = smul.u32 64, %s14
      %v174 = vld [vmem:[%s166] sm:$0xff]
      %v175 = vld [vmem:[%s166 + $0x8] sm:$0xff]
      %v176 = vld [vmem:[%s166 + $0x10] sm:$0xff]
      %v177 = vld [vmem:[%s166 + $0x18] sm:$0xff]
      %v178 = vld [vmem:[%s166 + $0x20] sm:$0xff]
      %v179 = vld [vmem:[%s166 + $0x28] sm:$0xff]
      %v180 = vld [vmem:[%s166 + $0x30] sm:$0xff]
      %v181 = vld [vmem:[%s166 + $0x38] sm:$0xff]
      %v182 = vld [vmem:[%s166 + $0x40] sm:$0xff]
      %v183 = vld [vmem:[%s166 + $0x48] sm:$0xff]
      %v184 = vld [vmem:[%s166 + $0x50] sm:$0xff]
      %v185 = vld [vmem:[%s166 + $0x58] sm:$0xff]
      %v186 = vld [vmem:[%s166 + $0x60] sm:$0xff]
      %v187 = vld [vmem:[%s166 + $0x68] sm:$0xff]
      %v188 = vld [vmem:[%s166 + $0x70] sm:$0xff]
      %v189 = vld [vmem:[%s166 + $0x78] sm:$0xff]
      %v190 = vld [vmem:[%s166 + $0x80] sm:$0xff]
      %v191 = vld [vmem:[%s166 + $0x88] sm:$0xff]
      %v192 = vld [vmem:[%s166 + $0x90] sm:$0xff]
      %v193 = vld [vmem:[%s166 + $0x98] sm:$0xff]
      %v194 = vld [vmem:[%s166 + $0xa0] sm:$0xff]
      %v195 = vld [vmem:[%s166 + $0xa8] sm:$0xff]
      %v196 = vld [vmem:[%s166 + $0xb0] sm:$0xff]
      %v197 = vld [vmem:[%s166 + $0xb8] sm:$0xff]
      %v198 = vld [vmem:[%s166 + $0xc0] sm:$0xff]
      %v199 = vld [vmem:[%s166 + $0xc8] sm:$0xff]
      %v200 = vld [vmem:[%s166 + $0xd0] sm:$0xff]
      %v201 = vld [vmem:[%s166 + $0xd8] sm:$0xff]
      %v202 = vld [vmem:[%s166 + $0xe0] sm:$0xff]
      %v203 = vld [vmem:[%s166 + $0xe8] sm:$0xff]
      %v204 = vld [vmem:[%s166 + $0xf0] sm:$0xff]
      %v205 = vld [vmem:[%s166 + $0xf8] sm:$0xff]
      %v206 = vld [vmem:[%s166 + $0x100] sm:$0xff]
      %v207 = vld [vmem:[%s166 + $0x108] sm:$0xff]
      %v208 = vld [vmem:[%s166 + $0x110] sm:$0xff]
      %v209 = vld [vmem:[%s166 + $0x118] sm:$0xff]
      %v210 = vld [vmem:[%s166 + $0x120] sm:$0xff]
      %v211 = vld [vmem:[%s166 + $0x128] sm:$0xff]
      %v212 = vld [vmem:[%s166 + $0x130] sm:$0xff]
      %v213 = vld [vmem:[%s166 + $0x138] sm:$0xff]
      %v214 = vld [vmem:[%s166 + $0x140] sm:$0xff]
      %v215 = vld [vmem:[%s166 + $0x148] sm:$0xff]
      %v216 = vld [vmem:[%s166 + $0x150] sm:$0xff]
      %v217 = vld [vmem:[%s166 + $0x158] sm:$0xff]
      %v218 = vld [vmem:[%s166 + $0x160] sm:$0xff]
      %v219 = vld [vmem:[%s166 + $0x168] sm:$0xff]
      %v220 = vld [vmem:[%s166 + $0x170] sm:$0xff]
      %v221 = vld [vmem:[%s166 + $0x178] sm:$0xff]
      %v222 = vld [vmem:[%s166 + $0x180] sm:$0xff]
      %v223 = vld [vmem:[%s166 + $0x188] sm:$0xff]
      %v224 = vld [vmem:[%s166 + $0x190] sm:$0xff]
      %v225 = vld [vmem:[%s166 + $0x198] sm:$0xff]
      %v226 = vld [vmem:[%s166 + $0x1a0] sm:$0xff]
      %v227 = vld [vmem:[%s166 + $0x1a8] sm:$0xff]
      %v228 = vld [vmem:[%s166 + $0x1b0] sm:$0xff]
      %v229 = vld [vmem:[%s166 + $0x1b8] sm:$0xff]
      %v230 = vld [vmem:[%s166 + $0x1c0] sm:$0xff]
      %v231 = vld [vmem:[%s166 + $0x1c8] sm:$0xff]
      %v232 = vld [vmem:[%s166 + $0x1d0] sm:$0xff]
      %v233 = vld [vmem:[%s166 + $0x1d8] sm:$0xff]
      %v234 = vld [vmem:[%s166 + $0x1e0] sm:$0xff]
      %v235 = vld [vmem:[%s166 + $0x1e8] sm:$0xff]
      %v236 = vld [vmem:[%s166 + $0x1f0] sm:$0xff]
      %v237 = vld [vmem:[%s166 + $0x1f8] sm:$0xff]
      %v238 = vld [vmem:[%s1] sm:$0xff]
      %v239 = vld [vmem:[%s1 + $0x8] sm:$0xff]
      %v240 = vld [vmem:[%s1 + $0x10] sm:$0xff]
      %v241 = vld [vmem:[%s1 + $0x18] sm:$0xff]
      %v242 = vld [vmem:[%s1 + $0x20] sm:$0xff]
      %v243 = vld [vmem:[%s1 + $0x28] sm:$0xff]
      %v244 = vld [vmem:[%s1 + $0x30] sm:$0xff]
      %v245 = vld [vmem:[%s1 + $0x38] sm:$0xff]
      %v246 = vld [vmem:[%s1 + $0x40] sm:$0xff]
      %v247 = vld [vmem:[%s1 + $0x48] sm:$0xff]
      %v248 = vld [vmem:[%s1 + $0x50] sm:$0xff]
      %v249 = vld [vmem:[%s1 + $0x58] sm:$0xff]
      %v250 = vld [vmem:[%s1 + $0x60] sm:$0xff]
      %v251 = vld [vmem:[%s1 + $0x68] sm:$0xff]
      %v252 = vld [vmem:[%s1 + $0x70] sm:$0xff]
      %v253 = vld [vmem:[%s1 + $0x78] sm:$0xff]
      %v254 = vld [vmem:[%s2] sm:$0x1]
      %v256 = vlaneseq
      %v257 = vshrl.u32 %v256, 7
      %v258 = vsub.s32 0, %v257
      %v259 = vrot.slane %v254, %v258
      %261 = vmatprep.subr.mxu0 0.0
      %262 = vmatpush1.msra.mxu0 %v253
      %263 = vmatprep.subr.mxu0 0.0
      %264 = vmatpush1.msra.mxu0 %v252
      %265 = vmatprep.subr.mxu0 0.0
      %266 = vmatpush1.msra.mxu0 %v251
      %267 = vmatprep.subr.mxu0 0.0
      %268 = vmatpush1.msra.mxu0 %v250
      %269 = vmatprep.subr.mxu0 0.0
      %270 = vmatpush1.msra.mxu0 %v249
      %271 = vmatprep.subr.mxu0 0.0
      %272 = vmatpush1.msra.mxu0 %v248
      %273 = vmatprep.subr.mxu0 0.0
      %274 = vmatpush1.msra.mxu0 %v247
      %275 = vmatprep.subr.mxu0 0.0
      %276 = vmatpush1.msra.mxu0 %v246
      %277 = vmatprep.subr.mxu0 0.0
      %278 = vmatpush1.msra.mxu0 %v245
      %279 = vmatprep.subr.mxu0 0.0
      %280 = vmatpush1.msra.mxu0 %v244
      %281 = vmatprep.subr.mxu0 0.0
      %282 = vmatpush1.msra.mxu0 %v243
      %283 = vmatprep.subr.mxu0 0.0
      %284 = vmatpush1.msra.mxu0 %v242
      %285 = vmatprep.subr.mxu0 0.0
      %286 = vmatpush1.msra.mxu0 %v241
      %287 = vmatprep.subr.mxu0 0.0
      %288 = vmatpush1.msra.mxu0 %v240
      %289 = vmatprep.subr.mxu0 0.0
      %290 = vmatpush1.msra.mxu0 %v239
      %291 = vmatprep.subr.mxu0 0.0
      %292 = vmatpush1.msra.mxu0 %v238
      %293 = vmatprep.subr.mxu0 0.0
      %294 = vmatpush2.msra.mxu0 0.0
      %295 = vmatprep.subr.mxu0 0.0
      %296 = vmatpush2.msra.mxu0 0.0
      %297 = vmatprep.subr.mxu0 0.0
      %298 = vmatpush2.msra.mxu0 0.0
      %299 = vmatprep.subr.mxu0 0.0
      %300 = vmatpush2.msra.mxu0 0.0
      %301 = vmatprep.subr.mxu0 0.0
      %302 = vmatpush2.msra.mxu0 0.0
      %303 = vmatprep.subr.mxu0 0.0
      %304 = vmatpush2.msra.mxu0 0.0
      %305 = vmatprep.subr.mxu0 0.0
      %306 = vmatpush2.msra.mxu0 0.0
      %307 = vmatprep.subr.mxu0 0.0
      %308 = vmatpush2.msra.mxu0 0.0
      %309 = vmatprep.subr.mxu0 0.0
      %310 = vmatpush2.msra.mxu0 0.0
      %311 = vmatprep.subr.mxu0 0.0
      %312 = vmatpush2.msra.mxu0 0.0
      %313 = vmatprep.subr.mxu0 0.0
      %314 = vmatpush2.msra.mxu0 0.0
      %315 = vmatprep.subr.mxu0 0.0
      %316 = vmatpush2.msra.mxu0 0.0
      %317 = vmatprep.subr.mxu0 0.0
      %318 = vmatpush2.msra.mxu0 0.0
      %319 = vmatprep.subr.mxu0 0.0
      %320 = vmatpush2.msra.mxu0 0.0
      %321 = vmatprep.subr.mxu0 0.0
      %322 = vmatpush2.msra.mxu0 0.0
      %323 = vmatprep.subr.mxu0 0.0
      %324 = vmatpush2.msra.mxu0 0.0
      %325 = vmatprep.mubr.f32.mxu0 0.0
      %326 = vmatmul.mubr.f32.gmra.mxu0 %v174
      %v327 = vpop.f32.mrf.mxu0
      %v328 = vadd.f32 %v259, %v327
      %v329 = vpop.f32.mrf.mxu0
      %330 = vmatprep.mubr.f32.mxu0 0.0
      %331 = vmatmul.mubr.f32.gmra.mxu0 %v175
      %v332 = vpop.f32.mrf.mxu0
      %v333 = vadd.f32 %v259, %v332
      %v334 = vpop.f32.mrf.mxu0
      %335 = vmatprep.mubr.f32.mxu0 0.0
      %336 = vmatmul.mubr.f32.gmra.mxu0 %v176
      %v337 = vpop.f32.mrf.mxu0
      %v338 = vadd.f32 %v259, %v337
      %v339 = vpop.f32.mrf.mxu0
      %340 = vmatprep.mubr.f32.mxu0 0.0
      %341 = vmatmul.mubr.f32.gmra.mxu0 %v177
      %v342 = vpop.f32.mrf.mxu0
      %v343 = vadd.f32 %v259, %v342
      %v344 = vpop.f32.mrf.mxu0
      %345 = vmatprep.mubr.f32.mxu0 0.0
      %346 = vmatmul.mubr.f32.gmra.mxu0 %v178
      %v347 = vpop.f32.mrf.mxu0
      %v348 = vadd.f32 %v259, %v347
      %v349 = vpop.f32.mrf.mxu0
      %350 = vmatprep.mubr.f32.mxu0 0.0
      %351 = vmatmul.mubr.f32.gmra.mxu0 %v179
      %v352 = vpop.f32.mrf.mxu0
      %v353 = vadd.f32 %v259, %v352
      %v354 = vpop.f32.mrf.mxu0
      %355 = vmatprep.mubr.f32.mxu0 0.0
      %356 = vmatmul.mubr.f32.gmra.mxu0 %v180
      %v357 = vpop.f32.mrf.mxu0
      %v358 = vadd.f32 %v259, %v357
      %v359 = vpop.f32.mrf.mxu0
      %360 = vmatprep.mubr.f32.mxu0 0.0
      %361 = vmatmul.mubr.f32.gmra.mxu0 %v181
      %v362 = vpop.f32.mrf.mxu0
      %v363 = vadd.f32 %v259, %v362
      %v364 = vpop.f32.mrf.mxu0
      %365 = vmatprep.mubr.f32.mxu0 0.0
      %366 = vmatmul.mubr.f32.gmra.mxu0 %v182
      %v367 = vpop.f32.mrf.mxu0
      %v368 = vadd.f32 %v259, %v367
      %v369 = vpop.f32.mrf.mxu0
      %370 = vmatprep.mubr.f32.mxu0 0.0
      %371 = vmatmul.mubr.f32.gmra.mxu0 %v183
      %v372 = vpop.f32.mrf.mxu0
      %v373 = vadd.f32 %v259, %v372
      %v374 = vpop.f32.mrf.mxu0
      %375 = vmatprep.mubr.f32.mxu0 0.0
      %376 = vmatmul.mubr.f32.gmra.mxu0 %v184
      %v377 = vpop.f32.mrf.mxu0
      %v378 = vadd.f32 %v259, %v377
      %v379 = vpop.f32.mrf.mxu0
      %380 = vmatprep.mubr.f32.mxu0 0.0
      %381 = vmatmul.mubr.f32.gmra.mxu0 %v185
      %v382 = vpop.f32.mrf.mxu0
      %v383 = vadd.f32 %v259, %v382
      %v384 = vpop.f32.mrf.mxu0
      %385 = vmatprep.mubr.f32.mxu0 0.0
      %386 = vmatmul.mubr.f32.gmra.mxu0 %v186
      %v387 = vpop.f32.mrf.mxu0
      %v388 = vadd.f32 %v259, %v387
      %v389 = vpop.f32.mrf.mxu0
      %390 = vmatprep.mubr.f32.mxu0 0.0
      %391 = vmatmul.mubr.f32.gmra.mxu0 %v187
      %v392 = vpop.f32.mrf.mxu0
      %v393 = vadd.f32 %v259, %v392
      %v394 = vpop.f32.mrf.mxu0
      %395 = vmatprep.mubr.f32.mxu0 0.0
      %396 = vmatmul.mubr.f32.gmra.mxu0 %v188
      %v397 = vpop.f32.mrf.mxu0
      %v398 = vadd.f32 %v259, %v397
      %v399 = vpop.f32.mrf.mxu0
      %400 = vmatprep.mubr.f32.mxu0 0.0
      %401 = vmatmul.mubr.f32.gmra.mxu0 %v189
      %v402 = vpop.f32.mrf.mxu0
      %v403 = vadd.f32 %v259, %v402
      %v404 = vpop.f32.mrf.mxu0
      %405 = vmatprep.mubr.f32.mxu0 0.0
      %406 = vmatmul.mubr.f32.gmra.mxu0 %v190
      %v407 = vpop.f32.mrf.mxu0
      %v408 = vadd.f32 %v259, %v407
      %v409 = vpop.f32.mrf.mxu0
      %410 = vmatprep.mubr.f32.mxu0 0.0
      %411 = vmatmul.mubr.f32.gmra.mxu0 %v191
      %v412 = vpop.f32.mrf.mxu0
      %v413 = vadd.f32 %v259, %v412
      %v414 = vpop.f32.mrf.mxu0
      %415 = vmatprep.mubr.f32.mxu0 0.0
      %416 = vmatmul.mubr.f32.gmra.mxu0 %v192
      %v417 = vpop.f32.mrf.mxu0
      %v418 = vadd.f32 %v259, %v417
      %v419 = vpop.f32.mrf.mxu0
      %420 = vmatprep.mubr.f32.mxu0 0.0
      %421 = vmatmul.mubr.f32.gmra.mxu0 %v193
      %v422 = vpop.f32.mrf.mxu0
      %v423 = vadd.f32 %v259, %v422
      %v424 = vpop.f32.mrf.mxu0
      %425 = vmatprep.mubr.f32.mxu0 0.0
      %426 = vmatmul.mubr.f32.gmra.mxu0 %v194
      %v427 = vpop.f32.mrf.mxu0
      %v428 = vadd.f32 %v259, %v427
      %v429 = vpop.f32.mrf.mxu0
      %430 = vmatprep.mubr.f32.mxu0 0.0
      %431 = vmatmul.mubr.f32.gmra.mxu0 %v195
      %v432 = vpop.f32.mrf.mxu0
      %v433 = vadd.f32 %v259, %v432
      %v434 = vpop.f32.mrf.mxu0
      %435 = vmatprep.mubr.f32.mxu0 0.0
      %436 = vmatmul.mubr.f32.gmra.mxu0 %v196
      %v437 = vpop.f32.mrf.mxu0
      %v438 = vadd.f32 %v259, %v437
      %v439 = vpop.f32.mrf.mxu0
      %440 = vmatprep.mubr.f32.mxu0 0.0
      %441 = vmatmul.mubr.f32.gmra.mxu0 %v197
      %v442 = vpop.f32.mrf.mxu0
      %v443 = vadd.f32 %v259, %v442
      %v444 = vpop.f32.mrf.mxu0
      %445 = vmatprep.mubr.f32.mxu0 0.0
      %446 = vmatmul.mubr.f32.gmra.mxu0 %v198
      %v447 = vpop.f32.mrf.mxu0
      %v448 = vadd.f32 %v259, %v447
      %v449 = vpop.f32.mrf.mxu0
      %450 = vmatprep.mubr.f32.mxu0 0.0
      %451 = vmatmul.mubr.f32.gmra.mxu0 %v199
      %v452 = vpop.f32.mrf.mxu0
      %v453 = vadd.f32 %v259, %v452
      %v454 = vpop.f32.mrf.mxu0
      %455 = vmatprep.mubr.f32.mxu0 0.0
      %456 = vmatmul.mubr.f32.gmra.mxu0 %v200
      %v457 = vpop.f32.mrf.mxu0
      %v458 = vadd.f32 %v259, %v457
      %v459 = vpop.f32.mrf.mxu0
      %460 = vmatprep.mubr.f32.mxu0 0.0
      %461 = vmatmul.mubr.f32.gmra.mxu0 %v201
      %v462 = vpop.f32.mrf.mxu0
      %v463 = vadd.f32 %v259, %v462
      %v464 = vpop.f32.mrf.mxu0
      %465 = vmatprep.mubr.f32.mxu0 0.0
      %466 = vmatmul.mubr.f32.gmra.mxu0 %v202
      %v467 = vpop.f32.mrf.mxu0
      %v468 = vadd.f32 %v259, %v467
      %v469 = vpop.f32.mrf.mxu0
      %470 = vmatprep.mubr.f32.mxu0 0.0
      %471 = vmatmul.mubr.f32.gmra.mxu0 %v203
      %v472 = vpop.f32.mrf.mxu0
      %v473 = vadd.f32 %v259, %v472
      %v474 = vpop.f32.mrf.mxu0
      %475 = vmatprep.mubr.f32.mxu0 0.0
      %476 = vmatmul.mubr.f32.gmra.mxu0 %v204
      %v477 = vpop.f32.mrf.mxu0
      %v478 = vadd.f32 %v259, %v477
      %v479 = vpop.f32.mrf.mxu0
      %480 = vmatprep.mubr.f32.mxu0 0.0
      %481 = vmatmul.mubr.f32.gmra.mxu0 %v205
      %v482 = vpop.f32.mrf.mxu0
      %v483 = vadd.f32 %v259, %v482
      %v484 = vpop.f32.mrf.mxu0
      %485 = vmatprep.mubr.f32.mxu0 0.0
      %486 = vmatmul.mubr.f32.gmra.mxu0 %v206
      %v487 = vpop.f32.mrf.mxu0
      %v488 = vadd.f32 %v259, %v487
      %v489 = vpop.f32.mrf.mxu0
      %490 = vmatprep.mubr.f32.mxu0 0.0
      %491 = vmatmul.mubr.f32.gmra.mxu0 %v207
      %v492 = vpop.f32.mrf.mxu0
      %v493 = vadd.f32 %v259, %v492
      %v494 = vpop.f32.mrf.mxu0
      %495 = vmatprep.mubr.f32.mxu0 0.0
      %496 = vmatmul.mubr.f32.gmra.mxu0 %v208
      %v497 = vpop.f32.mrf.mxu0
      %v498 = vadd.f32 %v259, %v497
      %v499 = vpop.f32.mrf.mxu0
      %500 = vmatprep.mubr.f32.mxu0 0.0
      %501 = vmatmul.mubr.f32.gmra.mxu0 %v209
      %v502 = vpop.f32.mrf.mxu0
      %v503 = vadd.f32 %v259, %v502
      %v504 = vpop.f32.mrf.mxu0
      %505 = vmatprep.mubr.f32.mxu0 0.0
      %506 = vmatmul.mubr.f32.gmra.mxu0 %v210
      %v507 = vpop.f32.mrf.mxu0
      %v508 = vadd.f32 %v259, %v507
      %v509 = vpop.f32.mrf.mxu0
      %510 = vmatprep.mubr.f32.mxu0 0.0
      %511 = vmatmul.mubr.f32.gmra.mxu0 %v211
      %v512 = vpop.f32.mrf.mxu0
      %v513 = vadd.f32 %v259, %v512
      %v514 = vpop.f32.mrf.mxu0
      %515 = vmatprep.mubr.f32.mxu0 0.0
      %516 = vmatmul.mubr.f32.gmra.mxu0 %v212
      %v517 = vpop.f32.mrf.mxu0
      %v518 = vadd.f32 %v259, %v517
      %v519 = vpop.f32.mrf.mxu0
      %520 = vmatprep.mubr.f32.mxu0 0.0
      %521 = vmatmul.mubr.f32.gmra.mxu0 %v213
      %v522 = vpop.f32.mrf.mxu0
      %v523 = vadd.f32 %v259, %v522
      %v524 = vpop.f32.mrf.mxu0
      %525 = vmatprep.mubr.f32.mxu0 0.0
      %526 = vmatmul.mubr.f32.gmra.mxu0 %v214
      %v527 = vpop.f32.mrf.mxu0
      %v528 = vadd.f32 %v259, %v527
      %v529 = vpop.f32.mrf.mxu0
      %530 = vmatprep.mubr.f32.mxu0 0.0
      %531 = vmatmul.mubr.f32.gmra.mxu0 %v215
      %v532 = vpop.f32.mrf.mxu0
      %v533 = vadd.f32 %v259, %v532
      %v534 = vpop.f32.mrf.mxu0
      %535 = vmatprep.mubr.f32.mxu0 0.0
      %536 = vmatmul.mubr.f32.gmra.mxu0 %v216
      %v537 = vpop.f32.mrf.mxu0
      %v538 = vadd.f32 %v259, %v537
      %v539 = vpop.f32.mrf.mxu0
      %540 = vmatprep.mubr.f32.mxu0 0.0
      %541 = vmatmul.mubr.f32.gmra.mxu0 %v217
      %v542 = vpop.f32.mrf.mxu0
      %v543 = vadd.f32 %v259, %v542
      %v544 = vpop.f32.mrf.mxu0
      %545 = vmatprep.mubr.f32.mxu0 0.0
      %546 = vmatmul.mubr.f32.gmra.mxu0 %v218
      %v547 = vpop.f32.mrf.mxu0
      %v548 = vadd.f32 %v259, %v547
      %v549 = vpop.f32.mrf.mxu0
      %550 = vmatprep.mubr.f32.mxu0 0.0
      %551 = vmatmul.mubr.f32.gmra.mxu0 %v219
      %v552 = vpop.f32.mrf.mxu0
      %v553 = vadd.f32 %v259, %v552
      %v554 = vpop.f32.mrf.mxu0
      %555 = vmatprep.mubr.f32.mxu0 0.0
      %556 = vmatmul.mubr.f32.gmra.mxu0 %v220
      %v557 = vpop.f32.mrf.mxu0
      %v558 = vadd.f32 %v259, %v557
      %v559 = vpop.f32.mrf.mxu0
      %560 = vmatprep.mubr.f32.mxu0 0.0
      %561 = vmatmul.mubr.f32.gmra.mxu0 %v221
      %v562 = vpop.f32.mrf.mxu0
      %v563 = vadd.f32 %v259, %v562
      %v564 = vpop.f32.mrf.mxu0
      %565 = vmatprep.mubr.f32.mxu0 0.0
      %566 = vmatmul.mubr.f32.gmra.mxu0 %v222
      %v567 = vpop.f32.mrf.mxu0
      %v568 = vadd.f32 %v259, %v567
      %v569 = vpop.f32.mrf.mxu0
      %570 = vmatprep.mubr.f32.mxu0 0.0
      %571 = vmatmul.mubr.f32.gmra.mxu0 %v223
      %v572 = vpop.f32.mrf.mxu0
      %v573 = vadd.f32 %v259, %v572
      %v574 = vpop.f32.mrf.mxu0
      %575 = vmatprep.mubr.f32.mxu0 0.0
      %576 = vmatmul.mubr.f32.gmra.mxu0 %v224
      %v577 = vpop.f32.mrf.mxu0
      %v578 = vadd.f32 %v259, %v577
      %v579 = vpop.f32.mrf.mxu0
      %580 = vmatprep.mubr.f32.mxu0 0.0
      %581 = vmatmul.mubr.f32.gmra.mxu0 %v225
      %v582 = vpop.f32.mrf.mxu0
      %v583 = vadd.f32 %v259, %v582
      %v584 = vpop.f32.mrf.mxu0
      %585 = vmatprep.mubr.f32.mxu0 0.0
      %586 = vmatmul.mubr.f32.gmra.mxu0 %v226
      %v587 = vpop.f32.mrf.mxu0
      %v588 = vadd.f32 %v259, %v587
      %v589 = vpop.f32.mrf.mxu0
      %590 = vmatprep.mubr.f32.mxu0 0.0
      %591 = vmatmul.mubr.f32.gmra.mxu0 %v227
      %v592 = vpop.f32.mrf.mxu0
      %v593 = vadd.f32 %v259, %v592
      %v594 = vpop.f32.mrf.mxu0
      %595 = vmatprep.mubr.f32.mxu0 0.0
      %596 = vmatmul.mubr.f32.gmra.mxu0 %v228
      %v597 = vpop.f32.mrf.mxu0
      %v598 = vadd.f32 %v259, %v597
      %v599 = vpop.f32.mrf.mxu0
      %600 = vmatprep.mubr.f32.mxu0 0.0
      %601 = vmatmul.mubr.f32.gmra.mxu0 %v229
      %v602 = vpop.f32.mrf.mxu0
      %v603 = vadd.f32 %v259, %v602
      %v604 = vpop.f32.mrf.mxu0
      %605 = vmatprep.mubr.f32.mxu0 0.0
      %606 = vmatmul.mubr.f32.gmra.mxu0 %v230
      %v607 = vpop.f32.mrf.mxu0
      %v608 = vadd.f32 %v259, %v607
      %v609 = vpop.f32.mrf.mxu0
      %610 = vmatprep.mubr.f32.mxu0 0.0
      %611 = vmatmul.mubr.f32.gmra.mxu0 %v231
      %v612 = vpop.f32.mrf.mxu0
      %v613 = vadd.f32 %v259, %v612
      %v614 = vpop.f32.mrf.mxu0
      %615 = vmatprep.mubr.f32.mxu0 0.0
      %616 = vmatmul.mubr.f32.gmra.mxu0 %v232
      %v617 = vpop.f32.mrf.mxu0
      %v618 = vadd.f32 %v259, %v617
      %v619 = vpop.f32.mrf.mxu0
      %620 = vmatprep.mubr.f32.mxu0 0.0
      %621 = vmatmul.mubr.f32.gmra.mxu0 %v233
      %v622 = vpop.f32.mrf.mxu0
      %v623 = vadd.f32 %v259, %v622
      %v624 = vpop.f32.mrf.mxu0
      %625 = vmatprep.mubr.f32.mxu0 0.0
      %626 = vmatmul.mubr.f32.gmra.mxu0 %v234
      %v627 = vpop.f32.mrf.mxu0
      %v628 = vadd.f32 %v259, %v627
      %v629 = vpop.f32.mrf.mxu0
      %630 = vmatprep.mubr.f32.mxu0 0.0
      %631 = vmatmul.mubr.f32.gmra.mxu0 %v235
      %v632 = vpop.f32.mrf.mxu0
      %v633 = vadd.f32 %v259, %v632
      %v634 = vpop.f32.mrf.mxu0
      %635 = vmatprep.mubr.f32.mxu0 0.0
      %636 = vmatmul.mubr.f32.gmra.mxu0 %v236
      %v637 = vpop.f32.mrf.mxu0
      %v638 = vadd.f32 %v259, %v637
      %v639 = vpop.f32.mrf.mxu0
      %640 = vmatprep.mubr.f32.mxu0 0.0
      %641 = vmatmul.mubr.f32.gmra.mxu0 %v237
      %v642 = vpop.f32.mrf.mxu0
      %v643 = vadd.f32 %v259, %v642
      %v644 = vpop.f32.mrf.mxu0
      %645 = vdwg.mxu0
      %646 = vst [vmem:[%s172] sm:$0xff] %v328
      %647 = vst [vmem:[%s172 + $0x8] sm:$0xff] %v333
      %648 = vst [vmem:[%s172 + $0x10] sm:$0xff] %v338
      %649 = vst [vmem:[%s172 + $0x18] sm:$0xff] %v343
      %650 = vst [vmem:[%s172 + $0x20] sm:$0xff] %v348
      %651 = vst [vmem:[%s172 + $0x28] sm:$0xff] %v353
      %652 = vst [vmem:[%s172 + $0x30] sm:$0xff] %v358
      %653 = vst [vmem:[%s172 + $0x38] sm:$0xff] %v363
      %654 = vst [vmem:[%s172 + $0x40] sm:$0xff] %v368
      %655 = vst [vmem:[%s172 + $0x48] sm:$0xff] %v373
      %656 = vst [vmem:[%s172 + $0x50] sm:$0xff] %v378
      %657 = vst [vmem:[%s172 + $0x58] sm:$0xff] %v383
      %658 = vst [vmem:[%s172 + $0x60] sm:$0xff] %v388
      %659 = vst [vmem:[%s172 + $0x68] sm:$0xff] %v393
      %660 = vst [vmem:[%s172 + $0x70] sm:$0xff] %v398
      %661 = vst [vmem:[%s172 + $0x78] sm:$0xff] %v403
      %662 = vst [vmem:[%s172 + $0x80] sm:$0xff] %v408
      %663 = vst [vmem:[%s172 + $0x88] sm:$0xff] %v413
      %664 = vst [vmem:[%s172 + $0x90] sm:$0xff] %v418
      %665 = vst [vmem:[%s172 + $0x98] sm:$0xff] %v423
      %666 = vst [vmem:[%s172 + $0xa0] sm:$0xff] %v428
      %667 = vst [vmem:[%s172 + $0xa8] sm:$0xff] %v433
      %668 = vst [vmem:[%s172 + $0xb0] sm:$0xff] %v438
      %669 = vst [vmem:[%s172 + $0xb8] sm:$0xff] %v443
      %670 = vst [vmem:[%s172 + $0xc0] sm:$0xff] %v448
      %671 = vst [vmem:[%s172 + $0xc8] sm:$0xff] %v453
      %672 = vst [vmem:[%s172 + $0xd0] sm:$0xff] %v458
      %673 = vst [vmem:[%s172 + $0xd8] sm:$0xff] %v463
      %674 = vst [vmem:[%s172 + $0xe0] sm:$0xff] %v468
      %675 = vst [vmem:[%s172 + $0xe8] sm:$0xff] %v473
      %676 = vst [vmem:[%s172 + $0xf0] sm:$0xff] %v478
      %677 = vst [vmem:[%s172 + $0xf8] sm:$0xff] %v483
      %678 = vst [vmem:[%s172 + $0x100] sm:$0xff] %v488
      %679 = vst [vmem:[%s172 + $0x108] sm:$0xff] %v493
      %680 = vst [vmem:[%s172 + $0x110] sm:$0xff] %v498
      %681 = vst [vmem:[%s172 + $0x118] sm:$0xff] %v503
      %682 = vst [vmem:[%s172 + $0x120] sm:$0xff] %v508
      %683 = vst [vmem:[%s172 + $0x128] sm:$0xff] %v513
      %684 = vst [vmem:[%s172 + $0x130] sm:$0xff] %v518
      %685 = vst [vmem:[%s172 + $0x138] sm:$0xff] %v523
      %686 = vst [vmem:[%s172 + $0x140] sm:$0xff] %v528
      %687 = vst [vmem:[%s172 + $0x148] sm:$0xff] %v533
      %688 = vst [vmem:[%s172 + $0x150] sm:$0xff] %v538
      %689 = vst [vmem:[%s172 + $0x158] sm:$0xff] %v543
      %690 = vst [vmem:[%s172 + $0x160] sm:$0xff] %v548
      %691 = vst [vmem:[%s172 + $0x168] sm:$0xff] %v553
      %692 = vst [vmem:[%s172 + $0x170] sm:$0xff] %v558
      %693 = vst [vmem:[%s172 + $0x178] sm:$0xff] %v563
      %694 = vst [vmem:[%s172 + $0x180] sm:$0xff] %v568
      %695 = vst [vmem:[%s172 + $0x188] sm:$0xff] %v573
      %696 = vst [vmem:[%s172 + $0x190] sm:$0xff] %v578
      %697 = vst [vmem:[%s172 + $0x198] sm:$0xff] %v583
      %698 = vst [vmem:[%s172 + $0x1a0] sm:$0xff] %v588
      %699 = vst [vmem:[%s172 + $0x1a8] sm:$0xff] %v593
      %700 = vst [vmem:[%s172 + $0x1b0] sm:$0xff] %v598
      %701 = vst [vmem:[%s172 + $0x1b8] sm:$0xff] %v603
      %702 = vst [vmem:[%s172 + $0x1c0] sm:$0xff] %v608
      %703 = vst [vmem:[%s172 + $0x1c8] sm:$0xff] %v613
      %704 = vst [vmem:[%s172 + $0x1d0] sm:$0xff] %v618
      %705 = vst [vmem:[%s172 + $0x1d8] sm:$0xff] %v623
      %706 = vst [vmem:[%s172 + $0x1e0] sm:$0xff] %v628
      %707 = vst [vmem:[%s172 + $0x1e8] sm:$0xff] %v633
      %708 = vst [vmem:[%s172 + $0x1f0] sm:$0xff] %v638
      %709 = vst [vmem:[%s172 + $0x1f8] sm:$0xff] %v643
      %s710 = smul.u32 64, %s14
      %p711 = scmp.lt.s32.totalorder %s710, 127
      %s712 = scalar_select %p711, %s710, 127
      %s713 = smul.addr %s712, 8
      %s714 = scalar_lea.vmem %s3, %s713
      // Predicated region
      $region33: #{a_call__.1} parent=31 // pred_check
        %p715 = pneg %p100
      $region34: #{a_call__.1} parent=31 // pred_check_branch
        %717 = sbr.rel (%p715) target = $region36
      $region35: #{a_call__.1} parent=31 // pred_region
        %s718 = smul.u32 64, %s14
      $region36: #{a_call__.1} parent=31 // pred_fallthru
        _
    $region32: #{a_call__.1} parent=5 // pred_fallthru
      _
    %p719 = scmp.le.s32.totalorder 2, %s9
    // Predicated region
    $region37: #{a_call__.1} parent=5 // pred_check
      %p720 = pneg %p719
    $region38: #{a_call__.1} parent=5 // pred_check_branch
      %722 = sbr.rel (%p720) target = $region40
    $region39: #{a_call__.1} parent=5 // pred_region
      %s723 = ssub.s32 %s9, 2
      // Predicated region
      $region41: #{a_call__.1} parent=39 // pred_check
        %p724 = pneg %p106
      $region42: #{a_call__.1} parent=39 // pred_check_branch
        %726 = sbr.rel (%p724) target = $region44
      $region43: #{a_call__.1} parent=39 // pred_region
        %s727 = smul.u32 64, %s15
        %p728 = scmp.lt.s32.totalorder %s727, 127
        %s729 = scalar_select %p728, %s727, 127
        %s730 = smul.addr %s729, 8
        %s731 = scalar_lea.vmem %s3, %s730
      $region44: #{a_call__.1} parent=39 // pred_fallthru
        _
    $region40: #{a_call__.1} parent=5 // pred_fallthru
      _
  $region6: #{a_call__.1} parent=0 // loop_footer
    %s13 = sadd.s32 1, %s9
  $region7: #{a_call__.1} parent=0 // loop_footer_branch
    %8 = sbr.rel target = $region3
  $region8: #{a_call__.1} parent=0 // loop_exit
    _

</llo_original>
